<compile_context>
chip_gen: v6e
topology: v6e:2x2x1
jax: 0.10.0
libtpu: 0.0.40
codegen_flags: <defaults>
</compile_context>

<pallas_src>
import functools

import jax
import jax.numpy as jnp
from jax.experimental import pallas as pl
from jax.experimental.pallas import tpu as pltpu


def _silu(x):
    # x * sigmoid(x); exp and approx reciprocal both run on the EUP slot.
    return x * pl.reciprocal(1.0 + jnp.exp(-x), approx=True)


def _residual_kernel(x_ref, w1_ref, b1_ref, w2_ref, b2_ref, o_ref):
    """One row-tile of the residual MLP (lane-packed layout).

    x_ref  : (tm, Dp)  input tile (Dp = P * D, lane-dense)
    w1_ref : (Dp, Dp)  block-diag Linear1 weight (in, out), VMEM-resident
    b1_ref : (1, Dp)   tiled bias
    w2_ref : (Dp, Dp)  block-diag Linear2 weight (in, out), VMEM-resident
    b2_ref : (1, Dp)   tiled bias
    o_ref  : (tm, Dp)
    """
    x = x_ref[...]
    h = _silu(x)
    h = jnp.dot(h, w1_ref[...], preferred_element_type=jnp.float32) + b1_ref[...]
    h = _silu(h)
    h = jnp.dot(h, w2_ref[...], preferred_element_type=jnp.float32) + b2_ref[...]
    o_ref[...] = (h + x).astype(o_ref.dtype)


def _round_up(n, m):
    return ((n + m - 1) // m) * m


@functools.partial(jax.jit, static_argnames=("tm_cap",))
def residual_forward(x, w1, b1, w2, b2, *, tm_cap=2048):
    """Pallas version of Residual.forward.

    x : (..., D) float32
    w1, w2 : (D, D) PyTorch nn.Linear weights, shape (out_features, in_features)
    b1, b2 : (D,)   biases
    """
    orig_shape = x.shape
    D = orig_shape[-1]
    x2 = x.reshape(-1, D)
    M = x2.shape[0]
    cdtype = jnp.float32

    # ---- lane packing: fold P rows into one 128-wide packed row ------------
    P = 128 // D if (D < 128 and 128 % D == 0) else 1
    Dp = P * D

    # Packed row count, row-tile size (multiple of 8 sublanes, capped), padding.
    rows = -(-M // P)                      # cdiv(M, P)
    tm = min(tm_cap, _round_up(rows, 8))
    rows_p = _round_up(rows, tm)
    M_pad = rows_p * P

    xp = jnp.pad(x2, ((0, M_pad - M), (0, 0))).astype(cdtype).reshape(rows_p, Dp)

    # Block-diagonal weights (in, out layout) and tiled biases; cast once here.
    eye_p = jnp.eye(P, dtype=cdtype)
    w1bd = jnp.kron(eye_p, w1.T.astype(cdtype))        # (Dp, Dp)
    w2bd = jnp.kron(eye_p, w2.T.astype(cdtype))        # (Dp, Dp)
    b1bd = jnp.tile(b1.astype(cdtype), P).reshape(1, Dp)
    b2bd = jnp.tile(b2.astype(cdtype), P).reshape(1, Dp)

    grid = (rows_p // tm,)
    out = pl.pallas_call(
        _residual_kernel,
        out_shape=jax.ShapeDtypeStruct((rows_p, Dp), cdtype),
        grid_spec=pltpu.PrefetchScalarGridSpec(
            num_scalar_prefetch=0,
            grid=grid,
            in_specs=[
                pl.BlockSpec((tm, Dp), lambda i: (i, 0)),   # x tile
                pl.BlockSpec((Dp, Dp), lambda i: (0, 0)),   # W1_bd (resident)
                pl.BlockSpec((1, Dp), lambda i: (0, 0)),    # b1
                pl.BlockSpec((Dp, Dp), lambda i: (0, 0)),   # W2_bd (resident)
                pl.BlockSpec((1, Dp), lambda i: (0, 0)),    # b2
            ],
            out_specs=pl.BlockSpec((tm, Dp), lambda i: (i, 0)),
        ),
        compiler_params=pltpu.CompilerParams(
            dimension_semantics=("parallel",),
            vmem_limit_bytes=32 * 1024 * 1024,
        ),
    )(xp, w1bd, b1bd, w2bd, b2bd)

    # Unpack lanes back to rows, drop padding, restore leading dims/dtype.
    out = out.reshape(M_pad, D)[:M].astype(x.dtype)
    return out.reshape(orig_shape)


def reference_forward(x, w1, b1, w2, b2):
    """Pure-JAX reference matching the PyTorch semantics exactly."""
    h = jax.nn.silu(x)
    h = h @ w1.T + b1
    h = jax.nn.silu(h)
    h = h @ w2.T + b2
    return h + x


if __name__ == "__main__":
    n_atom_basis = 32     # hidden / feature size D
    n_rows = 16           # flattened batch (e.g. atoms)

    key = jax.random.PRNGKey(0)
    kx, k1, k2, k3, k4 = jax.random.split(key, 5)

    # Deterministic parameter init (PyTorch nn.Linear shapes: (out, in), (out,))
    bound = 1.0 / jnp.sqrt(n_atom_basis)
    x = jax.random.normal(kx, (n_rows, n_atom_basis), dtype=jnp.float32)
    w1 = jax.random.uniform(k1, (n_atom_basis, n_atom_basis),
                            minval=-bound, maxval=bound, dtype=jnp.float32)
    b1 = jax.random.uniform(k2, (n_atom_basis,),
                            minval=-bound, maxval=bound, dtype=jnp.float32)
    w2 = jax.random.uniform(k3, (n_atom_basis, n_atom_basis),
                            minval=-bound, maxval=bound, dtype=jnp.float32)
    b2 = jax.random.uniform(k4, (n_atom_basis,),
                            minval=-bound, maxval=bound, dtype=jnp.float32)

    out = residual_forward(x, w1, b1, w2, b2)
    out = jax.block_until_ready(out)
    ref = reference_forward(x, w1, b1, w2, b2)
    assert out.shape == ref.shape and out.dtype == ref.dtype
    # approx=True reciprocal in SiLU -> small (~1e-3 rel) deviation vs exact.
    assert jnp.allclose(out, ref, atol=5e-3, rtol=5e-3), "mismatch vs reference"

    # Ragged row count (not a multiple of the lane-pack factor or the tile).
    x_ragged = jax.random.normal(kx, (7, n_atom_basis), dtype=jnp.float32)
    out_r = jax.block_until_ready(residual_forward(x_ragged, w1, b1, w2, b2))
    ref_r = reference_forward(x_ragged, w1, b1, w2, b2)
    assert out_r.shape == ref_r.shape
    assert jnp.allclose(out_r, ref_r, atol=5e-3, rtol=5e-3), "ragged mismatch"

    print("KERNEL_OK")
</pallas_src>

<mosaic_0001>
module attributes {stable_mosaic.version = 11 : i64} {
  func.func @_residual_kernel(%arg0: i32, %arg1: memref<8x128xf32, #tpu.memory_space<vmem>>, %arg2: memref<128x128xf32, #tpu.memory_space<vmem>>, %arg3: memref<1x128xf32, #tpu.memory_space<vmem>>, %arg4: memref<128x128xf32, #tpu.memory_space<vmem>>, %arg5: memref<1x128xf32, #tpu.memory_space<vmem>>, %arg6: memref<8x128xf32, #tpu.memory_space<vmem>>) attributes {dimension_semantics = [#tpu.dimension_semantics<parallel>], iteration_bounds = array<i64: 1>, scalar_prefetch = 0 : i64, scratch_operands = 0 : i64, tpu.core_type = #tpu.core_type<tc>, window_params = [{transform_indices = @transform_0, window_bounds = array<i64: 8, 128>}, {pipeline_mode = #tpu.pipeline_mode<synchronous>, transform_indices = @transform_1, window_bounds = array<i64: 128, 128>}, {pipeline_mode = #tpu.pipeline_mode<synchronous>, transform_indices = @transform_2, window_bounds = array<i64: 1, 128>}, {pipeline_mode = #tpu.pipeline_mode<synchronous>, transform_indices = @transform_3, window_bounds = array<i64: 128, 128>}, {pipeline_mode = #tpu.pipeline_mode<synchronous>, transform_indices = @transform_4, window_bounds = array<i64: 1, 128>}, {transform_indices = @transform_5, window_bounds = array<i64: 8, 128>}]} {
    %c0 = arith.constant 0 : index
    %c0_0 = arith.constant 0 : index
    %0 = vector.load %arg1[%c0, %c0_0] : memref<8x128xf32, #tpu.memory_space<vmem>>, vector<8x128xf32>
    %cst = arith.constant 0.000000e+00 : f32
    %1 = vector.broadcast %cst : f32 to vector<8x128xf32>
    %2 = arith.subf %1, %0 : vector<8x128xf32>
    %3 = math.exp %2 : vector<8x128xf32>
    %cst_1 = arith.constant 1.000000e+00 : f32
    %4 = vector.broadcast %cst_1 : f32 to vector<8x128xf32>
    %5 = arith.addf %4, %3 : vector<8x128xf32>
    %6 = tpu.reciprocal %5 {approx = true} : vector<8x128xf32> -> vector<8x128xf32>
    %7 = arith.mulf %0, %6 : vector<8x128xf32>
    %c0_2 = arith.constant 0 : index
    %c0_3 = arith.constant 0 : index
    %8 = vector.load %arg2[%c0_2, %c0_3] : memref<128x128xf32, #tpu.memory_space<vmem>>, vector<128x128xf32>
    %cst_4 = arith.constant dense<0.000000e+00> : vector<8x128xf32>
    %9 = tpu.matmul %7, %8, %cst_4 {dimension_numbers = #tpu.dot_dimension_numbers<[1], [0], [0], [1], [0, 0, 1, 1], [], []>} : vector<8x128xf32>, vector<128x128xf32>, vector<8x128xf32> -> vector<8x128xf32>
    %c0_5 = arith.constant 0 : index
    %c0_6 = arith.constant 0 : index
    %10 = vector.load %arg3[%c0_5, %c0_6] : memref<1x128xf32, #tpu.memory_space<vmem>>, vector<1x128xf32>
    %11 = vector.broadcast %10 : vector<1x128xf32> to vector<8x128xf32>
    %12 = arith.addf %9, %11 : vector<8x128xf32>
    %cst_7 = arith.constant 0.000000e+00 : f32
    %13 = vector.broadcast %cst_7 : f32 to vector<8x128xf32>
    %14 = arith.subf %13, %12 : vector<8x128xf32>
    %15 = math.exp %14 : vector<8x128xf32>
    %cst_8 = arith.constant 1.000000e+00 : f32
    %16 = vector.broadcast %cst_8 : f32 to vector<8x128xf32>
    %17 = arith.addf %16, %15 : vector<8x128xf32>
    %18 = tpu.reciprocal %17 {approx = true} : vector<8x128xf32> -> vector<8x128xf32>
    %19 = arith.mulf %12, %18 : vector<8x128xf32>
    %c0_9 = arith.constant 0 : index
    %c0_10 = arith.constant 0 : index
    %20 = vector.load %arg4[%c0_9, %c0_10] : memref<128x128xf32, #tpu.memory_space<vmem>>, vector<128x128xf32>
    %cst_11 = arith.constant dense<0.000000e+00> : vector<8x128xf32>
    %21 = tpu.matmul %19, %20, %cst_11 {dimension_numbers = #tpu.dot_dimension_numbers<[1], [0], [0], [1], [0, 0, 1, 1], [], []>} : vector<8x128xf32>, vector<128x128xf32>, vector<8x128xf32> -> vector<8x128xf32>
    %c0_12 = arith.constant 0 : index
    %c0_13 = arith.constant 0 : index
    %22 = vector.load %arg5[%c0_12, %c0_13] : memref<1x128xf32, #tpu.memory_space<vmem>>, vector<1x128xf32>
    %23 = vector.broadcast %22 : vector<1x128xf32> to vector<8x128xf32>
    %24 = arith.addf %21, %23 : vector<8x128xf32>
    %25 = arith.addf %24, %0 : vector<8x128xf32>
    %c0_14 = arith.constant 0 : index
    %c0_15 = arith.constant 0 : index
    %26 = vector.load %arg6[%c0_14, %c0_15] : memref<8x128xf32, #tpu.memory_space<vmem>>, vector<8x128xf32>
    tpu.vector_store %arg6[%c0_14, %c0_15], %25 {strides = array<i32>} : memref<8x128xf32, #tpu.memory_space<vmem>>, vector<8x128xf32>,
    return
  }
  func.func @transform_0(%arg0: i32) -> (i32, i32) {
    %c0_i32 = arith.constant 0 : i32
    %c0_i32_0 = arith.constant 0 : i32
    return %arg0, %c0_i32 : i32, i32
  }
  func.func @transform_1(%arg0: i32) -> (i32, i32) {
    %c0_i32 = arith.constant 0 : i32
    %c0_i32_0 = arith.constant 0 : i32
    %c0_i32_1 = arith.constant 0 : i32
    return %c0_i32, %c0_i32_0 : i32, i32
  }
  func.func @transform_2(%arg0: i32) -> (i32, i32) {
    %c0_i32 = arith.constant 0 : i32
    %c0_i32_0 = arith.constant 0 : i32
    %c0_i32_1 = arith.constant 0 : i32
    return %c0_i32, %c0_i32_0 : i32, i32
  }
  func.func @transform_3(%arg0: i32) -> (i32, i32) {
    %c0_i32 = arith.constant 0 : i32
    %c0_i32_0 = arith.constant 0 : i32
    %c0_i32_1 = arith.constant 0 : i32
    return %c0_i32, %c0_i32_0 : i32, i32
  }
  func.func @transform_4(%arg0: i32) -> (i32, i32) {
    %c0_i32 = arith.constant 0 : i32
    %c0_i32_0 = arith.constant 0 : i32
    %c0_i32_1 = arith.constant 0 : i32
    return %c0_i32, %c0_i32_0 : i32, i32
  }
  func.func @transform_5(%arg0: i32) -> (i32, i32) {
    %c0_i32 = arith.constant 0 : i32
    %c0_i32_0 = arith.constant 0 : i32
    return %arg0, %c0_i32 : i32, i32
  }
}

</mosaic_0001>

<llo_original>
// kernel: tile.13
$region0: #{tile.13}
  #allocation0 [shape = 's32[1]{0}', space=sflag, size = 0x4, scoped, tag = 'scoped memory for tile.13']
  %s0 = inlined_call_operand.vmem [shape: f32[32], index: 0, kind: input, shape index: {}]
  %s1 = inlined_call_operand.vmem [shape: f32[4,32], index: 1, kind: output, shape index: {}]
  // Predicated region
  $region2: #{tile.13} parent=0 // pred_check
    _
  $region3: #{tile.13} parent=0 // pred_check_branch
    %3 = sbr.rel (0) target = $region5
  $region4: #{tile.13} parent=0 // pred_region
    _
  $region5: #{tile.13} parent=0 // pred_fallthru
    _
  %v4 = vld [vmem:[%s0] ss:$0 sm:$0xff]
  %5 = vst [vmem:[%s1] sm:$0xf] %v4

// kernel: tile.14
$region0: #{tile.14}
  %s0 = inlined_call_operand.vmem [shape: f32[4,32], index: 0, kind: input, shape index: {}]
  %s1 = inlined_call_operand.vmem [shape: f32[1,128], index: 1, kind: output, shape index: {}]
  $region1: #{tile.14} parent=0
    #allocation0 [shape = 'u8[4096]{0}', space=vmem, size = 0x1000, scoped, tag = 'scoped mem for output reshape']
    #allocation1 [shape = 'u8[4096]{0}', space=vmem, size = 0x1000, scoped, tag = 'scoped mem for input reshape']
    %s3 = sshll.u32 1, 4
    %s4 = ssub.s32 %s3, 1
    %v5 = vld [vmem:[%s0] sm:%s4]
    %6 = vst [vmem:[#allocation1] sm:%s4] %v5
    %v7 = vld [vmem:[#allocation1] sm:$0x1]
    %vm8 = vcmask 261120
    %9 = vst.msk [vmem:[#allocation0] sm:$0x1] %vm8, %v7
    %s10 = scalar_lea.vmem [#allocation1], 3
    %v11 = vld [vmem:[%s10] sm:$0x1]
    %12 = vrot.lane.b32.xlu0 %v11, 96
    %v13 = vpop.permute.xlu0 %12
    %vm14 = vcmask 1048320
    %15 = vst.msk [vmem:[#allocation0] sm:$0x1] %vm14, %v13
    %s16 = scalar_lea.vmem [#allocation1], 2
    %v17 = vld [vmem:[%s16] sm:$0x1]
    %18 = vrot.lane.b32.xlu0 %v17, 64
    %v19 = vpop.permute.xlu0 %18
    %vm20 = vcmask 785920
    %21 = vst.msk [vmem:[#allocation0] sm:$0x1] %vm20, %v19
    %s22 = scalar_lea.vmem [#allocation1], 1
    %v23 = vld [vmem:[%s22] sm:$0x1]
    %24 = vrot.lane.b32.xlu0 %v23, 32
    %v25 = vpop.permute.xlu0 %24
    %vm26 = vcmask 523520
    %27 = vst.msk [vmem:[#allocation0] sm:$0x1] %vm26, %v25
    %s29 = sshll.u32 1, 1
    %s30 = ssub.s32 %s29, 1
    %v32 = vld [vmem:[#allocation0] sm:%s30]
    %s33 = sshll.u32 1, 1
    %s34 = ssub.s32 %s33, 1
    %35 = vst [vmem:[%s1] sm:%s34] %v32

// kernel: residual_forward.1
$region0: #{residual_forward.1}
  #allocation0 [shape = 'u32[]', space=smem, size = 0x4, offset = 0x4, fixed_abs, tag = 'smem constant byte address 0x4 - core index']
  #allocation1 [shape = 'u32[144,128]{1,0:T(1,128)}', space=vmem, size = 0x12000, scoped, tag = 'internal scratch']
  %s0 = inlined_call_operand.vmem [shape: f32[8,128], index: 0, kind: input, shape index: {}]
  %s1 = inlined_call_operand.vmem [shape: f32[128,128], index: 1, kind: input, shape index: {}]
  %s2 = inlined_call_operand.vmem [shape: f32[1,128], index: 2, kind: input, shape index: {}]
  %s3 = inlined_call_operand.vmem [shape: f32[128,128], index: 3, kind: input, shape index: {}]
  %s4 = inlined_call_operand.vmem [shape: f32[1,128], index: 4, kind: input, shape index: {}]
  %s5 = inlined_call_operand.vmem [shape: f32[8,128], index: 5, kind: output, shape index: {}]
  %s6 = sld [smem:[#allocation0]]
  $region30: #{residual_forward.1} parent=0
    _
  %s8 = ssub.s32 1, %s6
  %s9 = scalar_select 0, %s8, %s6
  // Predicated region
  $region2: #{residual_forward.1} parent=0 // pred_check
    _
  $region3: #{residual_forward.1} parent=0 // pred_check_branch
    %11 = sbr.rel (0) target = $region5
  $region4: #{residual_forward.1} parent=0 // pred_region
    _
  $region5: #{residual_forward.1} parent=0 // pred_fallthru
    _
  // Predicated region
  $region6: #{residual_forward.1} parent=0 // pred_check
    _
  $region7: #{residual_forward.1} parent=0 // pred_check_branch
    %13 = sbr.rel (0) target = $region9
  $region8: #{residual_forward.1} parent=0 // pred_region
    _
  $region9: #{residual_forward.1} parent=0 // pred_fallthru
    _
  // Predicated region
  $region10: #{residual_forward.1} parent=0 // pred_check
    _
  $region11: #{residual_forward.1} parent=0 // pred_check_branch
    %15 = sbr.rel (0) target = $region13
  $region12: #{residual_forward.1} parent=0 // pred_region
    _
  $region13: #{residual_forward.1} parent=0 // pred_fallthru
    _
  // Predicated region
  $region14: #{residual_forward.1} parent=0 // pred_check
    _
  $region15: #{residual_forward.1} parent=0 // pred_check_branch
    %17 = sbr.rel (0) target = $region17
  $region16: #{residual_forward.1} parent=0 // pred_region
    _
  $region17: #{residual_forward.1} parent=0 // pred_fallthru
    _
  // Predicated region
  $region18: #{residual_forward.1} parent=0 // pred_check
    _
  $region19: #{residual_forward.1} parent=0 // pred_check_branch
    %19 = sbr.rel (0) target = $region21
  $region20: #{residual_forward.1} parent=0 // pred_region
    _
  $region21: #{residual_forward.1} parent=0 // pred_fallthru
    _
  %v20 = vld [vmem:[%s0] sm:$0xff]
  %v21 = vsub.f32 0.0, %v20
  %v22 = vmul.f32 %v21, 1.442695
  %v23 = vpow.pop %v22
  %v24 = vadd.f32 %v23, 1.0
  %v25 = vrcp.pop %v24
  %v26 = vmul.f32 %v20, %v25
  %v27 = vld [vmem:[%s1] sm:$0xff]
  %v28 = vld [vmem:[%s1 + $0x8] sm:$0xff]
  %v29 = vld [vmem:[%s1 + $0x10] sm:$0xff]
  %v30 = vld [vmem:[%s1 + $0x18] sm:$0xff]
  %v31 = vld [vmem:[%s1 + $0x20] sm:$0xff]
  %v32 = vld [vmem:[%s1 + $0x28] sm:$0xff]
  %v33 = vld [vmem:[%s1 + $0x30] sm:$0xff]
  %v34 = vld [vmem:[%s1 + $0x38] sm:$0xff]
  %v35 = vld [vmem:[%s1 + $0x40] sm:$0xff]
  %v36 = vld [vmem:[%s1 + $0x48] sm:$0xff]
  %v37 = vld [vmem:[%s1 + $0x50] sm:$0xff]
  %v38 = vld [vmem:[%s1 + $0x58] sm:$0xff]
  %v39 = vld [vmem:[%s1 + $0x60] sm:$0xff]
  %v40 = vld [vmem:[%s1 + $0x68] sm:$0xff]
  %v41 = vld [vmem:[%s1 + $0x70] sm:$0xff]
  %v42 = vld [vmem:[%s1 + $0x78] sm:$0xff]
  %v43 = vld [vmem:[%s2] sm:$0x1]
  %v45 = vlaneseq
  %v46 = vshrl.u32 %v45, 7
  %v47 = vsub.s32 0, %v46
  %v48 = vrot.slane %v43, %v47
  %50 = vmatprep.subr.mxu0 0.0
  %51 = vmatpush1.msra.mxu0 %v42
  %52 = vmatprep.subr.mxu0 0.0
  %53 = vmatpush1.msra.mxu0 %v41
  %54 = vmatprep.subr.mxu0 0.0
  %55 = vmatpush1.msra.mxu0 %v40
  %56 = vmatprep.subr.mxu0 0.0
  %57 = vmatpush1.msra.mxu0 %v39
  %58 = vmatprep.subr.mxu0 0.0
  %59 = vmatpush1.msra.mxu0 %v38
  %60 = vmatprep.subr.mxu0 0.0
  %61 = vmatpush1.msra.mxu0 %v37
  %62 = vmatprep.subr.mxu0 0.0
  %63 = vmatpush1.msra.mxu0 %v36
  %64 = vmatprep.subr.mxu0 0.0
  %65 = vmatpush1.msra.mxu0 %v35
  %66 = vmatprep.subr.mxu0 0.0
  %67 = vmatpush1.msra.mxu0 %v34
  %68 = vmatprep.subr.mxu0 0.0
  %69 = vmatpush1.msra.mxu0 %v33
  %70 = vmatprep.subr.mxu0 0.0
  %71 = vmatpush1.msra.mxu0 %v32
  %72 = vmatprep.subr.mxu0 0.0
  %73 = vmatpush1.msra.mxu0 %v31
  %74 = vmatprep.subr.mxu0 0.0
  %75 = vmatpush1.msra.mxu0 %v30
  %76 = vmatprep.subr.mxu0 0.0
  %77 = vmatpush1.msra.mxu0 %v29
  %78 = vmatprep.subr.mxu0 0.0
  %79 = vmatpush1.msra.mxu0 %v28
  %80 = vmatprep.subr.mxu0 0.0
  %81 = vmatpush1.msra.mxu0 %v27
  %82 = vmatprep.subr.mxu0 0.0
  %83 = vmatpush2.msra.mxu0 0.0
  %84 = vmatprep.subr.mxu0 0.0
  %85 = vmatpush2.msra.mxu0 0.0
  %86 = vmatprep.subr.mxu0 0.0
  %87 = vmatpush2.msra.mxu0 0.0
  %88 = vmatprep.subr.mxu0 0.0
  %89 = vmatpush2.msra.mxu0 0.0
  %90 = vmatprep.subr.mxu0 0.0
  %91 = vmatpush2.msra.mxu0 0.0
  %92 = vmatprep.subr.mxu0 0.0
  %93 = vmatpush2.msra.mxu0 0.0
  %94 = vmatprep.subr.mxu0 0.0
  %95 = vmatpush2.msra.mxu0 0.0
  %96 = vmatprep.subr.mxu0 0.0
  %97 = vmatpush2.msra.mxu0 0.0
  %98 = vmatprep.subr.mxu0 0.0
  %99 = vmatpush2.msra.mxu0 0.0
  %100 = vmatprep.subr.mxu0 0.0
  %101 = vmatpush2.msra.mxu0 0.0
  %102 = vmatprep.subr.mxu0 0.0
  %103 = vmatpush2.msra.mxu0 0.0
  %104 = vmatprep.subr.mxu0 0.0
  %105 = vmatpush2.msra.mxu0 0.0
  %106 = vmatprep.subr.mxu0 0.0
  %107 = vmatpush2.msra.mxu0 0.0
  %108 = vmatprep.subr.mxu0 0.0
  %109 = vmatpush2.msra.mxu0 0.0
  %110 = vmatprep.subr.mxu0 0.0
  %111 = vmatpush2.msra.mxu0 0.0
  %112 = vmatprep.subr.mxu0 0.0
  %113 = vmatpush2.msra.mxu0 0.0
  %114 = vmatprep.mubr.f32.mxu0 0.0
  %115 = vmatmul.mubr.f32.gmra.mxu0 %v26
  %v116 = vpop.f32.mrf.mxu0
  %v117 = vadd.f32 %v48, %v116
  %v118 = vpop.f32.mrf.mxu0
  %119 = vdwg.mxu0
  %v120 = vsub.f32 0.0, %v117
  %v121 = vmul.f32 %v120, 1.442695
  %v122 = vpow.pop %v121
  %v123 = vadd.f32 %v122, 1.0
  %v124 = vrcp.pop %v123
  %v125 = vmul.f32 %v117, %v124
  %v126 = vld [vmem:[%s3] sm:$0xff]
  %v127 = vld [vmem:[%s3 + $0x8] sm:$0xff]
  %v128 = vld [vmem:[%s3 + $0x10] sm:$0xff]
  %v129 = vld [vmem:[%s3 + $0x18] sm:$0xff]
  %v130 = vld [vmem:[%s3 + $0x20] sm:$0xff]
  %v131 = vld [vmem:[%s3 + $0x28] sm:$0xff]
  %v132 = vld [vmem:[%s3 + $0x30] sm:$0xff]
  %v133 = vld [vmem:[%s3 + $0x38] sm:$0xff]
  %v134 = vld [vmem:[%s3 + $0x40] sm:$0xff]
  %v135 = vld [vmem:[%s3 + $0x48] sm:$0xff]
  %v136 = vld [vmem:[%s3 + $0x50] sm:$0xff]
  %v137 = vld [vmem:[%s3 + $0x58] sm:$0xff]
  %v138 = vld [vmem:[%s3 + $0x60] sm:$0xff]
  %v139 = vld [vmem:[%s3 + $0x68] sm:$0xff]
  %v140 = vld [vmem:[%s3 + $0x70] sm:$0xff]
  %v141 = vld [vmem:[%s3 + $0x78] sm:$0xff]
  %v142 = vld [vmem:[%s4] sm:$0x1]
  %v144 = vlaneseq
  %v145 = vshrl.u32 %v144, 7
  %v146 = vsub.s32 0, %v145
  %v147 = vrot.slane %v142, %v146
  %149 = vmatprep.subr.mxu0 0.0
  %150 = vmatpush1.msra.mxu0 %v141
  %151 = vmatprep.subr.mxu0 0.0
  %152 = vmatpush1.msra.mxu0 %v140
  %153 = vmatprep.subr.mxu0 0.0
  %154 = vmatpush1.msra.mxu0 %v139
  %155 = vmatprep.subr.mxu0 0.0
  %156 = vmatpush1.msra.mxu0 %v138
  %157 = vmatprep.subr.mxu0 0.0
  %158 = vmatpush1.msra.mxu0 %v137
  %159 = vmatprep.subr.mxu0 0.0
  %160 = vmatpush1.msra.mxu0 %v136
  %161 = vmatprep.subr.mxu0 0.0
  %162 = vmatpush1.msra.mxu0 %v135
  %163 = vmatprep.subr.mxu0 0.0
  %164 = vmatpush1.msra.mxu0 %v134
  %165 = vmatprep.subr.mxu0 0.0
  %166 = vmatpush1.msra.mxu0 %v133
  %167 = vmatprep.subr.mxu0 0.0
  %168 = vmatpush1.msra.mxu0 %v132
  %169 = vmatprep.subr.mxu0 0.0
  %170 = vmatpush1.msra.mxu0 %v131
  %171 = vmatprep.subr.mxu0 0.0
  %172 = vmatpush1.msra.mxu0 %v130
  %173 = vmatprep.subr.mxu0 0.0
  %174 = vmatpush1.msra.mxu0 %v129
  %175 = vmatprep.subr.mxu0 0.0
  %176 = vmatpush1.msra.mxu0 %v128
  %177 = vmatprep.subr.mxu0 0.0
  %178 = vmatpush1.msra.mxu0 %v127
  %179 = vmatprep.subr.mxu0 0.0
  %180 = vmatpush1.msra.mxu0 %v126
  %181 = vmatprep.subr.mxu0 0.0
  %182 = vmatpush2.msra.mxu0 0.0
  %183 = vmatprep.subr.mxu0 0.0
  %184 = vmatpush2.msra.mxu0 0.0
  %185 = vmatprep.subr.mxu0 0.0
  %186 = vmatpush2.msra.mxu0 0.0
  %187 = vmatprep.subr.mxu0 0.0
  %188 = vmatpush2.msra.mxu0 0.0
  %189 = vmatprep.subr.mxu0 0.0
  %190 = vmatpush2.msra.mxu0 0.0
  %191 = vmatprep.subr.mxu0 0.0
  %192 = vmatpush2.msra.mxu0 0.0
  %193 = vmatprep.subr.mxu0 0.0
  %194 = vmatpush2.msra.mxu0 0.0
  %195 = vmatprep.subr.mxu0 0.0
  %196 = vmatpush2.msra.mxu0 0.0
  %197 = vmatprep.subr.mxu0 0.0
  %198 = vmatpush2.msra.mxu0 0.0
  %199 = vmatprep.subr.mxu0 0.0
  %200 = vmatpush2.msra.mxu0 0.0
  %201 = vmatprep.subr.mxu0 0.0
  %202 = vmatpush2.msra.mxu0 0.0
  %203 = vmatprep.subr.mxu0 0.0
  %204 = vmatpush2.msra.mxu0 0.0
  %205 = vmatprep.subr.mxu0 0.0
  %206 = vmatpush2.msra.mxu0 0.0
  %207 = vmatprep.subr.mxu0 0.0
  %208 = vmatpush2.msra.mxu0 0.0
  %209 = vmatprep.subr.mxu0 0.0
  %210 = vmatpush2.msra.mxu0 0.0
  %211 = vmatprep.subr.mxu0 0.0
  %212 = vmatpush2.msra.mxu0 0.0
  %213 = vmatprep.mubr.f32.mxu0 0.0
  %214 = vmatmul.mubr.f32.gmra.mxu0 %v125
  %v215 = vpop.f32.mrf.mxu0
  %v216 = vadd.f32 %v147, %v215
  %v217 = vpop.f32.mrf.mxu0
  %218 = vdwg.mxu0
  %v219 = vadd.f32 %v216, %v20
  %220 = vst [vmem:[%s5] sm:$0xff] %v219
  // Predicated region
  $region22: #{residual_forward.1} parent=0 // pred_check
    _
  $region23: #{residual_forward.1} parent=0 // pred_check_branch
    %222 = sbr.rel (0) target = $region25
  $region24: #{residual_forward.1} parent=0 // pred_region
    _
  $region25: #{residual_forward.1} parent=0 // pred_fallthru
    _
  // Predicated region
  $region26: #{residual_forward.1} parent=0 // pred_check
    _
  $region27: #{residual_forward.1} parent=0 // pred_check_branch
    %224 = sbr.rel (0) target = $region29
  $region28: #{residual_forward.1} parent=0 // pred_region
    _
  $region29: #{residual_forward.1} parent=0 // pred_fallthru
    _

</llo_original>
